<compile_context>
chip_gen: v6e
topology: v6e:2x2x1
jax: 0.10.0
libtpu: 0.0.40
codegen_flags: <defaults>
</compile_context>

<pallas_src>
import functools

import jax
import jax.numpy as jnp
from jax.experimental import pallas as pl
from jax.experimental.pallas import tpu as pltpu


def _round_up(x, m):
    return ((x + m - 1) // m) * m


def _proj_kernel(x_ref, wt_ref, b_ref, q_ref, k_ref, v_ref, *,
                 n_heads, proj_size, compute_dtype):
    """One (batch, seq-tile) grid step.

    x_ref:  (TS, E)      activation tile
    wt_ref: (3, E, E)    VMEM-resident weight; wt_ref[c] = W_c^T  (in, out)
    b_ref:  (3, 1, E)    f32 bias rows, one per q/k/v chunk
    q_ref, k_ref, v_ref: (H, TS, P) blocks of the (B, H, S, P) outputs
    """
    x = x_ref[...].astype(compute_dtype)          # bf16 MXU operands, f32 accumulation
    out_refs = (q_ref, k_ref, v_ref)
    for c in range(3):                            # q, k, v chunks: (TS, E) live intermediate
        y = jnp.dot(x, wt_ref[c], preferred_element_type=jnp.float32)
        y = y + b_ref[c]                          # (1, E) f32 bias, broadcast over rows
        y = y.astype(out_refs[c].dtype)           # (TS, E)
        # Head split + (seq, head) transpose built on-chip, so each tensor is
        # written with a single full-block store instead of H masked stores.
        blk = jnp.stack(
            [y[:, h * proj_size:(h + 1) * proj_size] for h in range(n_heads)],
            axis=0)                               # (H, TS, P)
        out_refs[c][...] = blk


def prepare_projection_params(weight, bias, *, compute_dtype=jnp.bfloat16):
    """One-time parameter prep (call at init, OUTSIDE the jitted forward).

    weight: (3E, E) torch nn.Linear layout; bias: (3E,).
    Returns wt3 (3, E, E) with wt3[c] = W_c^T in `compute_dtype`, b3 (3, 1, E) f32.
    """
    three_e, e = weight.shape
    assert three_e == 3 * e and bias.shape == (three_e,)
    wt3 = jnp.transpose(weight.reshape(3, e, e), (0, 2, 1)).astype(compute_dtype)
    b3 = bias.astype(jnp.float32).reshape(3, 1, e)
    return wt3, b3


def multi_head_self_projection(x, wt3, b3, n_heads, *, seq_tile=512,
                               compute_dtype=jnp.bfloat16):
    """Pallas forward of MultiHeadSelfProjection.

    x:   (B, S, E)
    wt3: (3, E, E)  from prepare_projection_params
    b3:  (3, 1, E)  from prepare_projection_params
    returns (q, k, v), each (B, n_heads, S, E // n_heads), dtype = x.dtype
    """
    B, S, E = x.shape
    assert E % n_heads == 0
    P = E // n_heads
    assert wt3.shape == (3, E, E) and b3.shape == (3, 1, E)

    # Sequence tiling: TS is a multiple of 8 or equals S, so the (8, 128) block
    # rule is always satisfied (the lane dims E / P equal the full array dims).
    TS = min(int(seq_tile), S)
    # v7x shards "parallel" grid axes over 2 TensorCores: make sure small calls
    # (e.g. B == 1, short S) still expose >= 2 tiles.
    if B * pl.cdiv(S, TS) < 2 and S >= 16:
        TS = max(8, _round_up(pl.cdiv(S, 2), 8))
    grid = (B, pl.cdiv(S, TS))
    # TODO(synk): ragged last tile (S % TS != 0) relies on Pallas boundary
    # clipping (padded rows are wasted MXU work, clipped on write).

    kernel = functools.partial(_proj_kernel, n_heads=n_heads, proj_size=P,
                               compute_dtype=compute_dtype)

    out_sds = jax.ShapeDtypeStruct((B, n_heads, S, P), x.dtype)
    qkv_spec = pl.BlockSpec((None, n_heads, TS, P), lambda b, s: (b, 0, s, 0))

    itemsize = jnp.dtype(x.dtype).itemsize
    cost = pl.CostEstimate(
        flops=6 * B * S * E * E,
        transcendentals=0,
        bytes_accessed=(4 * B * S * E * itemsize
                        + int(wt3.size) * jnp.dtype(wt3.dtype).itemsize
                        + int(b3.size) * jnp.dtype(b3.dtype).itemsize),
    )

    # TODO(synk): for very large E, tile the resident (3, E, E) weight over K/N
    # and single-buffer it (pipeline_mode=pl.Buffered(1)) for v7x's 64 MiB VMEM;
    # at bf16 and E <= ~2048 the resident weight fits comfortably under the
    # limit below.
    q, k, v = pl.pallas_call(
        kernel,
        out_shape=(out_sds, out_sds, out_sds),
        grid=grid,
        in_specs=[
            pl.BlockSpec((None, TS, E), lambda b, s: (b, s, 0)),     # x tile
            pl.BlockSpec((3, E, E), lambda b, s: (0, 0, 0)),         # weight, VMEM-resident
            pl.BlockSpec((3, 1, E), lambda b, s: (0, 0, 0)),         # bias, VMEM-resident
        ],
        out_specs=(qkv_spec, qkv_spec, qkv_spec),
        compiler_params=pltpu.CompilerParams(
            dimension_semantics=("parallel", "parallel"),
            vmem_limit_bytes=48 * 1024 * 1024,
        ),
        cost_estimate=cost,
    )(x, wt3, b3)
    return q, k, v


if __name__ == "__main__":
    # Small shapes consistent with the module: batch=2, seq=16, emb=32, heads=4.
    B, S, E, H = 2, 16, 32, 4
    P = E // H

    key = jax.random.PRNGKey(0)
    kx, kw, kb = jax.random.split(key, 3)
    x = jax.random.normal(kx, (B, S, E), dtype=jnp.float32)
    weight = jax.random.normal(kw, (3 * E, E), dtype=jnp.float32) * 0.1
    bias = jax.random.normal(kb, (3 * E,), dtype=jnp.float32) * 0.1

    # Pure-JAX reference replicating the torch module exactly.
    y = jnp.einsum("bse,ce->bsc", x, weight) + bias            # (B, S, 3E)
    y = y.reshape(B, S, 3, H, P)
    refs = tuple(jnp.transpose(y[:, :, c], (0, 2, 1, 3)) for c in range(3))

    # f32-operand path: tight check of the kernel's indexing / math.
    wt3_f32, b3 = prepare_projection_params(weight, bias, compute_dtype=jnp.float32)
    outs_f32 = multi_head_self_projection(x, wt3_f32, b3, H, compute_dtype=jnp.float32)
    outs_f32 = jax.block_until_ready(outs_f32)
    for got, ref in zip(outs_f32, refs):
        if not jnp.allclose(got, ref, atol=1e-4, rtol=1e-4):
            raise AssertionError("f32 Pallas MultiHeadSelfProjection mismatch vs reference")

    # Default bf16-operand path (MXU-friendly): f32 accumulation, looser tolerance.
    wt3_bf16, b3 = prepare_projection_params(weight, bias)     # one-time, at init
    outs = multi_head_self_projection(x, wt3_bf16, b3, H)
    outs = jax.block_until_ready(outs)
    for got, ref in zip(outs, refs):
        if not jnp.allclose(got, ref, atol=5e-2, rtol=5e-2):
            raise AssertionError("bf16 Pallas MultiHeadSelfProjection mismatch vs reference")

    print("KERNEL_OK")
</pallas_src>

<mosaic_0001>
module attributes {stable_mosaic.version = 11 : i64} {
  func.func @_proj_kernel(%arg0: i32, %arg1: i32, %arg2: memref<1x16x32xf32, #tpu.memory_space<vmem>>, %arg3: memref<3x32x32xf32, #tpu.memory_space<vmem>>, %arg4: memref<3x1x32xf32, #tpu.memory_space<vmem>>, %arg5: memref<1x4x16x8xf32, #tpu.memory_space<vmem>>, %arg6: memref<1x4x16x8xf32, #tpu.memory_space<vmem>>, %arg7: memref<1x4x16x8xf32, #tpu.memory_space<vmem>>) attributes {dimension_semantics = [#tpu.dimension_semantics<parallel>, #tpu.dimension_semantics<parallel>], iteration_bounds = array<i64: 2, 1>, scalar_prefetch = 0 : i64, scratch_operands = 0 : i64, tpu.core_type = #tpu.core_type<tc>, window_params = [{transform_indices = @transform_0, window_bounds = array<i64: 1, 16, 32>}, {pipeline_mode = #tpu.pipeline_mode<synchronous>, transform_indices = @transform_1, window_bounds = array<i64: 3, 32, 32>}, {pipeline_mode = #tpu.pipeline_mode<synchronous>, transform_indices = @transform_2, window_bounds = array<i64: 3, 1, 32>}, {transform_indices = @transform_3, window_bounds = array<i64: 1, 4, 16, 8>}, {transform_indices = @transform_4, window_bounds = array<i64: 1, 4, 16, 8>}, {transform_indices = @transform_5, window_bounds = array<i64: 1, 4, 16, 8>}]} {
    %c0 = arith.constant 0 : index
    %c0_0 = arith.constant 0 : index
    %c0_1 = arith.constant 0 : index
    %0 = vector.load %arg2[%c0, %c0_0, %c0_1] : memref<1x16x32xf32, #tpu.memory_space<vmem>>, vector<1x16x32xf32>
    %1 = vector.shape_cast %0 : vector<1x16x32xf32> to vector<16x32xf32>
    %c0_2 = arith.constant 0 : index
    %c0_3 = arith.constant 0 : index
    %c0_4 = arith.constant 0 : index
    %2 = vector.load %arg3[%c0_2, %c0_3, %c0_4] : memref<3x32x32xf32, #tpu.memory_space<vmem>>, vector<1x32x32xf32>
    %3 = vector.shape_cast %2 : vector<1x32x32xf32> to vector<32x32xf32>
    %cst = arith.constant dense<0.000000e+00> : vector<16x32xf32>
    %4 = tpu.matmul %1, %3, %cst {dimension_numbers = #tpu.dot_dimension_numbers<[1], [0], [0], [1], [0, 0, 1, 1], [], []>} : vector<16x32xf32>, vector<32x32xf32>, vector<16x32xf32> -> vector<16x32xf32>
    %c0_5 = arith.constant 0 : index
    %c0_6 = arith.constant 0 : index
    %c0_7 = arith.constant 0 : index
    %5 = vector.load %arg4[%c0_5, %c0_6, %c0_7] : memref<3x1x32xf32, #tpu.memory_space<vmem>>, vector<1x1x32xf32>
    %6 = vector.shape_cast %5 : vector<1x1x32xf32> to vector<1x32xf32>
    %7 = vector.broadcast %6 : vector<1x32xf32> to vector<16x32xf32>
    %8 = arith.addf %4, %7 : vector<16x32xf32>
    %9 = vector.extract_strided_slice %8 {offsets = [0, 0], sizes = [16, 8], strides = [1, 1]} : vector<16x32xf32> to vector<16x8xf32>
    %10 = vector.extract_strided_slice %8 {offsets = [0, 8], sizes = [16, 8], strides = [1, 1]} : vector<16x32xf32> to vector<16x8xf32>
    %11 = vector.extract_strided_slice %8 {offsets = [0, 16], sizes = [16, 8], strides = [1, 1]} : vector<16x32xf32> to vector<16x8xf32>
    %12 = vector.extract_strided_slice %8 {offsets = [0, 24], sizes = [16, 8], strides = [1, 1]} : vector<16x32xf32> to vector<16x8xf32>
    %13 = vector.shape_cast %9 : vector<16x8xf32> to vector<1x16x8xf32>
    %14 = vector.shape_cast %10 : vector<16x8xf32> to vector<1x16x8xf32>
    %15 = vector.shape_cast %11 : vector<16x8xf32> to vector<1x16x8xf32>
    %16 = vector.shape_cast %12 : vector<16x8xf32> to vector<1x16x8xf32>
    %17 = tpu.concatenate %13, %14, %15, %16 in 0 : vector<1x16x8xf32>, vector<1x16x8xf32>, vector<1x16x8xf32>, vector<1x16x8xf32> -> vector<4x16x8xf32>
    %c0_8 = arith.constant 0 : index
    %c0_9 = arith.constant 0 : index
    %c0_10 = arith.constant 0 : index
    %c0_11 = arith.constant 0 : index
    %18 = vector.load %arg5[%c0_8, %c0_9, %c0_10, %c0_11] : memref<1x4x16x8xf32, #tpu.memory_space<vmem>>, vector<1x4x16x8xf32>
    %19 = vector.shape_cast %18 : vector<1x4x16x8xf32> to vector<4x16x8xf32>
    %20 = vector.shape_cast %17 : vector<4x16x8xf32> to vector<1x4x16x8xf32>
    tpu.vector_store %arg5[%c0_8, %c0_9, %c0_10, %c0_11], %20 {strides = array<i32>} : memref<1x4x16x8xf32, #tpu.memory_space<vmem>>, vector<1x4x16x8xf32>,
    %c1 = arith.constant 1 : index
    %c0_12 = arith.constant 0 : index
    %c0_13 = arith.constant 0 : index
    %21 = vector.load %arg3[%c1, %c0_12, %c0_13] : memref<3x32x32xf32, #tpu.memory_space<vmem>>, vector<1x32x32xf32>
    %22 = vector.shape_cast %21 : vector<1x32x32xf32> to vector<32x32xf32>
    %cst_14 = arith.constant dense<0.000000e+00> : vector<16x32xf32>
    %23 = tpu.matmul %1, %22, %cst_14 {dimension_numbers = #tpu.dot_dimension_numbers<[1], [0], [0], [1], [0, 0, 1, 1], [], []>} : vector<16x32xf32>, vector<32x32xf32>, vector<16x32xf32> -> vector<16x32xf32>
    %c1_15 = arith.constant 1 : index
    %c0_16 = arith.constant 0 : index
    %c0_17 = arith.constant 0 : index
    %24 = vector.load %arg4[%c1_15, %c0_16, %c0_17] : memref<3x1x32xf32, #tpu.memory_space<vmem>>, vector<1x1x32xf32>
    %25 = vector.shape_cast %24 : vector<1x1x32xf32> to vector<1x32xf32>
    %26 = vector.broadcast %25 : vector<1x32xf32> to vector<16x32xf32>
    %27 = arith.addf %23, %26 : vector<16x32xf32>
    %28 = vector.extract_strided_slice %27 {offsets = [0, 0], sizes = [16, 8], strides = [1, 1]} : vector<16x32xf32> to vector<16x8xf32>
    %29 = vector.extract_strided_slice %27 {offsets = [0, 8], sizes = [16, 8], strides = [1, 1]} : vector<16x32xf32> to vector<16x8xf32>
    %30 = vector.extract_strided_slice %27 {offsets = [0, 16], sizes = [16, 8], strides = [1, 1]} : vector<16x32xf32> to vector<16x8xf32>
    %31 = vector.extract_strided_slice %27 {offsets = [0, 24], sizes = [16, 8], strides = [1, 1]} : vector<16x32xf32> to vector<16x8xf32>
    %32 = vector.shape_cast %28 : vector<16x8xf32> to vector<1x16x8xf32>
    %33 = vector.shape_cast %29 : vector<16x8xf32> to vector<1x16x8xf32>
    %34 = vector.shape_cast %30 : vector<16x8xf32> to vector<1x16x8xf32>
    %35 = vector.shape_cast %31 : vector<16x8xf32> to vector<1x16x8xf32>
    %36 = tpu.concatenate %32, %33, %34, %35 in 0 : vector<1x16x8xf32>, vector<1x16x8xf32>, vector<1x16x8xf32>, vector<1x16x8xf32> -> vector<4x16x8xf32>
    %c0_18 = arith.constant 0 : index
    %c0_19 = arith.constant 0 : index
    %c0_20 = arith.constant 0 : index
    %c0_21 = arith.constant 0 : index
    %37 = vector.load %arg6[%c0_18, %c0_19, %c0_20, %c0_21] : memref<1x4x16x8xf32, #tpu.memory_space<vmem>>, vector<1x4x16x8xf32>
    %38 = vector.shape_cast %37 : vector<1x4x16x8xf32> to vector<4x16x8xf32>
    %39 = vector.shape_cast %36 : vector<4x16x8xf32> to vector<1x4x16x8xf32>
    tpu.vector_store %arg6[%c0_18, %c0_19, %c0_20, %c0_21], %39 {strides = array<i32>} : memref<1x4x16x8xf32, #tpu.memory_space<vmem>>, vector<1x4x16x8xf32>,
    %c2 = arith.constant 2 : index
    %c0_22 = arith.constant 0 : index
    %c0_23 = arith.constant 0 : index
    %40 = vector.load %arg3[%c2, %c0_22, %c0_23] : memref<3x32x32xf32, #tpu.memory_space<vmem>>, vector<1x32x32xf32>
    %41 = vector.shape_cast %40 : vector<1x32x32xf32> to vector<32x32xf32>
    %cst_24 = arith.constant dense<0.000000e+00> : vector<16x32xf32>
    %42 = tpu.matmul %1, %41, %cst_24 {dimension_numbers = #tpu.dot_dimension_numbers<[1], [0], [0], [1], [0, 0, 1, 1], [], []>} : vector<16x32xf32>, vector<32x32xf32>, vector<16x32xf32> -> vector<16x32xf32>
    %c2_25 = arith.constant 2 : index
    %c0_26 = arith.constant 0 : index
    %c0_27 = arith.constant 0 : index
    %43 = vector.load %arg4[%c2_25, %c0_26, %c0_27] : memref<3x1x32xf32, #tpu.memory_space<vmem>>, vector<1x1x32xf32>
    %44 = vector.shape_cast %43 : vector<1x1x32xf32> to vector<1x32xf32>
    %45 = vector.broadcast %44 : vector<1x32xf32> to vector<16x32xf32>
    %46 = arith.addf %42, %45 : vector<16x32xf32>
    %47 = vector.extract_strided_slice %46 {offsets = [0, 0], sizes = [16, 8], strides = [1, 1]} : vector<16x32xf32> to vector<16x8xf32>
    %48 = vector.extract_strided_slice %46 {offsets = [0, 8], sizes = [16, 8], strides = [1, 1]} : vector<16x32xf32> to vector<16x8xf32>
    %49 = vector.extract_strided_slice %46 {offsets = [0, 16], sizes = [16, 8], strides = [1, 1]} : vector<16x32xf32> to vector<16x8xf32>
    %50 = vector.extract_strided_slice %46 {offsets = [0, 24], sizes = [16, 8], strides = [1, 1]} : vector<16x32xf32> to vector<16x8xf32>
    %51 = vector.shape_cast %47 : vector<16x8xf32> to vector<1x16x8xf32>
    %52 = vector.shape_cast %48 : vector<16x8xf32> to vector<1x16x8xf32>
    %53 = vector.shape_cast %49 : vector<16x8xf32> to vector<1x16x8xf32>
    %54 = vector.shape_cast %50 : vector<16x8xf32> to vector<1x16x8xf32>
    %55 = tpu.concatenate %51, %52, %53, %54 in 0 : vector<1x16x8xf32>, vector<1x16x8xf32>, vector<1x16x8xf32>, vector<1x16x8xf32> -> vector<4x16x8xf32>
    %c0_28 = arith.constant 0 : index
    %c0_29 = arith.constant 0 : index
    %c0_30 = arith.constant 0 : index
    %c0_31 = arith.constant 0 : index
    %56 = vector.load %arg7[%c0_28, %c0_29, %c0_30, %c0_31] : memref<1x4x16x8xf32, #tpu.memory_space<vmem>>, vector<1x4x16x8xf32>
    %57 = vector.shape_cast %56 : vector<1x4x16x8xf32> to vector<4x16x8xf32>
    %58 = vector.shape_cast %55 : vector<4x16x8xf32> to vector<1x4x16x8xf32>
    tpu.vector_store %arg7[%c0_28, %c0_29, %c0_30, %c0_31], %58 {strides = array<i32>} : memref<1x4x16x8xf32, #tpu.memory_space<vmem>>, vector<1x4x16x8xf32>,
    return
  }
  func.func @transform_0(%arg0: i32, %arg1: i32) -> (i32, i32, i32) {
    %c0_i32 = arith.constant 0 : i32
    %c0_i32_0 = arith.constant 0 : i32
    return %arg0, %arg1, %c0_i32 : i32, i32, i32
  }
  func.func @transform_1(%arg0: i32, %arg1: i32) -> (i32, i32, i32) {
    %c0_i32 = arith.constant 0 : i32
    %c0_i32_0 = arith.constant 0 : i32
    %c0_i32_1 = arith.constant 0 : i32
    %c0_i32_2 = arith.constant 0 : i32
    return %c0_i32, %c0_i32_0, %c0_i32_1 : i32, i32, i32
  }
  func.func @transform_2(%arg0: i32, %arg1: i32) -> (i32, i32, i32) {
    %c0_i32 = arith.constant 0 : i32
    %c0_i32_0 = arith.constant 0 : i32
    %c0_i32_1 = arith.constant 0 : i32
    %c0_i32_2 = arith.constant 0 : i32
    return %c0_i32, %c0_i32_0, %c0_i32_1 : i32, i32, i32
  }
  func.func @transform_3(%arg0: i32, %arg1: i32) -> (i32, i32, i32, i32) {
    %c0_i32 = arith.constant 0 : i32
    %c0_i32_0 = arith.constant 0 : i32
    %c0_i32_1 = arith.constant 0 : i32
    return %arg0, %c0_i32, %arg1, %c0_i32_0 : i32, i32, i32, i32
  }
  func.func @transform_4(%arg0: i32, %arg1: i32) -> (i32, i32, i32, i32) {
    %c0_i32 = arith.constant 0 : i32
    %c0_i32_0 = arith.constant 0 : i32
    %c0_i32_1 = arith.constant 0 : i32
    return %arg0, %c0_i32, %arg1, %c0_i32_0 : i32, i32, i32, i32
  }
  func.func @transform_5(%arg0: i32, %arg1: i32) -> (i32, i32, i32, i32) {
    %c0_i32 = arith.constant 0 : i32
    %c0_i32_0 = arith.constant 0 : i32
    %c0_i32_1 = arith.constant 0 : i32
    return %arg0, %c0_i32, %arg1, %c0_i32_0 : i32, i32, i32, i32
  }
}

</mosaic_0001>

<llo_original>
// kernel: tpu_custom_call.1
$region0: #{tpu_custom_call.1}
  #allocation0 [shape = 'u32[]', space=smem, size = 0x4, offset = 0x4, fixed_abs, tag = 'smem constant byte address 0x4 - core index']
  #allocation1 [shape = 'u32[144,128]{1,0:T(1,128)}', space=vmem, size = 0x12000, scoped, tag = 'internal scratch']
  %s0 = inlined_call_operand.hbm [shape: f32[2,16,32], index: 0, kind: input, shape index: {}]
  %s1 = inlined_call_operand.hbm [shape: f32[3,32,32], index: 1, kind: input, shape index: {}]
  %s2 = inlined_call_operand.vmem [shape: f32[3,1,32], index: 2, kind: input, shape index: {}]
  %s3 = inlined_call_operand.vmem [shape: f32[2,4,16,8], index: 3, kind: output, shape index: {0}]
  %s4 = inlined_call_operand.vmem [shape: f32[2,4,16,8], index: 4, kind: output, shape index: {1}]
  %s5 = inlined_call_operand.vmem [shape: f32[2,4,16,8], index: 5, kind: output, shape index: {2}]
  %6 = xla_tuple %s3, %s4, %s5
  %s7 = sld [smem:[#allocation0]]
  $region69: #{tpu_custom_call.1} parent=0
    _
  %s9 = ssub.s32 1, %s7
  %s10 = scalar_select 0, %s9, %s7
  $region1: #{tpu_custom_call.1} parent=0
    #allocation2 [shape = 'u8[16384]{0}', space=vmem, size = 0x4000, scoped, tag = 'input window, operand 0']
    #allocation3 [shape = 's32[2]{0}', space=sflag, size = 0x8, scoped, tag = 'scoped memory for tpu_custom_call.1']
    #allocation4 [shape = 'u8[49152]{0}', space=vmem, size = 0xc000, scoped, tag = 'input window, operand 1, single buffered']
    #allocation5 [shape = 's32[1]{0}', space=sflag, size = 0x4, scoped, tag = 'scoped memory for tpu_custom_call.1']
    %11 = vsyncpa [#allocation3], 0
    %s12 = scalar_lea.sflag [#allocation3], 1
    %13 = vsyncpa %s12, 0
    %14 = vsyncpa [#allocation5], 0
    loop: start=0, step=1, limit=4
    $region2: #{tpu_custom_call.1} parent=1 // loop_pre_header
      _
    $region3: #{tpu_custom_call.1} parent=1 // loop_header
      %s16 = sphi 0, %s20
      %p17 = scmp.ge.s32.totalorder %s16, 4
      %s23 = sphi 0, %s35
      %s24 = sphi 0, %s31
      %s25 = sphi 0, %s23
      %s26 = sphi 0, %s24
      %s27 = sphi 0, %s25
      %s28 = sphi 0, %s26
      %s40 = sphi 0, %s42
      %s43 = sphi 0, %s40
      %s44 = sphi 0, %s43
      %s60 = sphi 0, %s44
      %s64 = sphi 0, %s64
      %s66 = sphi 0, %s64
      %s67 = sphi 0, %s66
      %s81 = sphi 0, %s67
      %s85 = sphi 0, %s85
      %s87 = sphi 0, %s85
      %s88 = sphi 0, %s87
      %s102 = sphi 0, %s88
      %s110 = sphi 0, %s112
      %s113 = sphi 0, %s110
      %s114 = sphi 0, %s113
      %s130 = sphi 0, %s114
      %s138 = sphi 0, %s140
      %s141 = sphi 0, %s138
      %s142 = sphi 0, %s141
      %s158 = sphi 0, %s142
      %s166 = sphi 0, %s168
      %s169 = sphi 0, %s166
      %s170 = sphi 0, %s169
      %s186 = sphi 0, %s170
    $region4: #{tpu_custom_call.1} parent=1 // loop_header_branch
      %19 = sbr.rel (%p17) target = $region8
    $region5: #{tpu_custom_call.1} parent=1 // loop_body
      %s21 = ssub.s32 %s16, 1
      %s22 = ssub.s32 %s16, 2
      %s29 = sadd.s32 1, %s24
      %p30 = scmp.ge.s32.totalorder %s29, 1
      %s31 = scalar_select %p30, 0, %s29
      %s32 = sadd.s32 1, %s23
      %s33 = scalar_select %p30, %s32, %s23
      %p34 = scmp.ge.s32.totalorder %s33, 2
      %s35 = scalar_select %p34, 0, %s33
      %s36 = ssub.s32 %s23, %s35
      %s37 = ssub.s32 %s24, %s31
      %s38 = sor.u32 %s36, %s37
      %p39 = scmp.eq.s32.totalorder %s38, 0
      %s41 = sadd.s32 %s40, 1
      %s42 = scalar_select %p39, %s40, %s41
      %p45 = pneg %p39
      %p46 = scmp.eq.s32.totalorder %s16, 1
      %p47 = por %p45, %p46
      %p48 = scmp.ne.s32.totalorder %s40, %s43
      %p49 = scmp.eq.s32.totalorder %s16, 0
      %p50 = por %p48, %p49
      %p51 = scmp.ne.s32.totalorder %s40, %s43
      %p52 = scmp.eq.s32.totalorder %s21, 1
      %p53 = por %p51, %p52
      %p54 = scmp.ne.s32.totalorder %s43, %s44
      %p55 = scmp.eq.s32.totalorder %s21, 0
      %p56 = por %p54, %p55
      %p57 = scmp.ne.s32.totalorder %s43, %s44
      %p58 = scmp.eq.s32.totalorder %s22, 1
      %p59 = por %p57, %p58
      %p61 = scmp.ne.s32.totalorder %s44, %s60
      %p62 = scmp.eq.s32.totalorder %s22, 0
      %p63 = por %p61, %p62
      %s65 = sadd.s32 %s64, 1
      %p68 = scmp.eq.s32.totalorder %s16, 1
      %p69 = scmp.ne.s32.totalorder %s64, %s66
      %p70 = scmp.eq.s32.totalorder %s16, 0
      %p71 = por %p69, %p70
      %p72 = scmp.ne.s32.totalorder %s64, %s66
      %p73 = scmp.eq.s32.totalorder %s21, 1
      %p74 = por %p72, %p73
      %p75 = scmp.ne.s32.totalorder %s66, %s67
      %p76 = scmp.eq.s32.totalorder %s21, 0
      %p77 = por %p75, %p76
      %p78 = scmp.ne.s32.totalorder %s66, %s67
      %p79 = scmp.eq.s32.totalorder %s22, 1
      %p80 = por %p78, %p79
      %p82 = scmp.ne.s32.totalorder %s67, %s81
      %p83 = scmp.eq.s32.totalorder %s22, 0
      %p84 = por %p82, %p83
      %s86 = sadd.s32 %s85, 1
      %p89 = scmp.eq.s32.totalorder %s16, 1
      %p90 = scmp.ne.s32.totalorder %s85, %s87
      %p91 = scmp.eq.s32.totalorder %s16, 0
      %p92 = por %p90, %p91
      %p93 = scmp.ne.s32.totalorder %s85, %s87
      %p94 = scmp.eq.s32.totalorder %s21, 1
      %p95 = por %p93, %p94
      %p96 = scmp.ne.s32.totalorder %s87, %s88
      %p97 = scmp.eq.s32.totalorder %s21, 0
      %p98 = por %p96, %p97
      %p99 = scmp.ne.s32.totalorder %s87, %s88
      %p100 = scmp.eq.s32.totalorder %s22, 1
      %p101 = por %p99, %p100
      %p103 = scmp.ne.s32.totalorder %s88, %s102
      %p104 = scmp.eq.s32.totalorder %s22, 0
      %p105 = por %p103, %p104
      %s106 = ssub.s32 %s23, %s35
      %s107 = ssub.s32 %s24, %s31
      %s108 = sor.u32 %s106, %s107
      %p109 = scmp.eq.s32.totalorder %s108, 0
      %s111 = sadd.s32 %s110, 1
      %s112 = scalar_select %p109, %s110, %s111
      %p115 = pneg %p109
      %p116 = scmp.eq.s32.totalorder %s16, 1
      %p117 = por %p115, %p116
      %p118 = scmp.ne.s32.totalorder %s110, %s113
      %p119 = scmp.eq.s32.totalorder %s16, 0
      %p120 = por %p118, %p119
      %p121 = scmp.ne.s32.totalorder %s110, %s113
      %p122 = scmp.eq.s32.totalorder %s21, 1
      %p123 = por %p121, %p122
      %p124 = scmp.ne.s32.totalorder %s113, %s114
      %p125 = scmp.eq.s32.totalorder %s21, 0
      %p126 = por %p124, %p125
      %p127 = scmp.ne.s32.totalorder %s113, %s114
      %p128 = scmp.eq.s32.totalorder %s22, 1
      %p129 = por %p127, %p128
      %p131 = scmp.ne.s32.totalorder %s114, %s130
      %p132 = scmp.eq.s32.totalorder %s22, 0
      %p133 = por %p131, %p132
      %s134 = ssub.s32 %s23, %s35
      %s135 = ssub.s32 %s24, %s31
      %s136 = sor.u32 %s134, %s135
      %p137 = scmp.eq.s32.totalorder %s136, 0
      %s139 = sadd.s32 %s138, 1
      %s140 = scalar_select %p137, %s138, %s139
      %p143 = pneg %p137
      %p144 = scmp.eq.s32.totalorder %s16, 1
      %p145 = por %p143, %p144
      %p146 = scmp.ne.s32.totalorder %s138, %s141
      %p147 = scmp.eq.s32.totalorder %s16, 0
      %p148 = por %p146, %p147
      %p149 = scmp.ne.s32.totalorder %s138, %s141
      %p150 = scmp.eq.s32.totalorder %s21, 1
      %p151 = por %p149, %p150
      %p152 = scmp.ne.s32.totalorder %s141, %s142
      %p153 = scmp.eq.s32.totalorder %s21, 0
      %p154 = por %p152, %p153
      %p155 = scmp.ne.s32.totalorder %s141, %s142
      %p156 = scmp.eq.s32.totalorder %s22, 1
      %p157 = por %p155, %p156
      %p159 = scmp.ne.s32.totalorder %s142, %s158
      %p160 = scmp.eq.s32.totalorder %s22, 0
      %p161 = por %p159, %p160
      %s162 = ssub.s32 %s23, %s35
      %s163 = ssub.s32 %s24, %s31
      %s164 = sor.u32 %s162, %s163
      %p165 = scmp.eq.s32.totalorder %s164, 0
      %s167 = sadd.s32 %s166, 1
      %s168 = scalar_select %p165, %s166, %s167
      %p171 = pneg %p165
      %p172 = scmp.eq.s32.totalorder %s16, 1
      %p173 = por %p171, %p172
      %p174 = scmp.ne.s32.totalorder %s166, %s169
      %p175 = scmp.eq.s32.totalorder %s16, 0
      %p176 = por %p174, %p175
      %p177 = scmp.ne.s32.totalorder %s166, %s169
      %p178 = scmp.eq.s32.totalorder %s21, 1
      %p179 = por %p177, %p178
      %p180 = scmp.ne.s32.totalorder %s169, %s170
      %p181 = scmp.eq.s32.totalorder %s21, 0
      %p182 = por %p180, %p181
      %p183 = scmp.ne.s32.totalorder %s169, %s170
      %p184 = scmp.eq.s32.totalorder %s22, 1
      %p185 = por %p183, %p184
      %p187 = scmp.ne.s32.totalorder %s170, %s186
      %p188 = scmp.eq.s32.totalorder %s22, 0
      %p189 = por %p187, %p188
      %p190 = scmp.le.s32.totalorder 1, %s16
      %p191 = scmp.lt.s32.totalorder %s16, 3
      %p192 = pnand %p190, %p191
      %p193 = pneg %p192
      // Predicated region
      $region9: #{tpu_custom_call.1} parent=5 // pred_check
        _
      $region10: #{tpu_custom_call.1} parent=5 // pred_check_branch
        %195 = sbr.rel (%p192) target = $region12
      $region11: #{tpu_custom_call.1} parent=5 // pred_region
        %s196 = ssub.s32 %s16, 1
        // Predicated region
        $region13: #{tpu_custom_call.1} parent=11 // pred_check
          %p197 = pneg %p77
        $region14: #{tpu_custom_call.1} parent=11 // pred_check_branch
          %199 = sbr.rel (%p197) target = $region16
        $region15: #{tpu_custom_call.1} parent=11 // pred_region
          %s201 = ssub.s32 1536, 1536
          %202 = vsyncadd [#allocation5], %s201
          %s203 = sshll.u32 [#allocation4], 4
          %s204 = int_to_ptr.vmem [resolvable:$true] %s203
          %209 = dma.hbm_to_vmem [thread:$0]  %s1, 1536, %s204, [#allocation5], 128, 128, 8
        $region16: #{tpu_custom_call.1} parent=11 // pred_fallthru
          _
        // Predicated region
        $region17: #{tpu_custom_call.1} parent=11 // pred_check
          %p210 = pneg %p98
        $region18: #{tpu_custom_call.1} parent=11 // pred_check_branch
          %212 = sbr.rel (%p210) target = $region20
        $region19: #{tpu_custom_call.1} parent=11 // pred_region
          _
        $region20: #{tpu_custom_call.1} parent=11 // pred_fallthru
          _
      $region12: #{tpu_custom_call.1} parent=5 // pred_fallthru
        _
      %p213 = scmp.lt.s32.totalorder %s16, 2
      // Predicated region
      $region21: #{tpu_custom_call.1} parent=5 // pred_check
        %p214 = pneg %p213
      $region22: #{tpu_custom_call.1} parent=5 // pred_check_branch
        %216 = sbr.rel (%p214) target = $region24
      $region23: #{tpu_custom_call.1} parent=5 // pred_region
        // Predicated region
        $region25: #{tpu_custom_call.1} parent=23 // pred_check
          %p217 = pneg %p50
        $region26: #{tpu_custom_call.1} parent=23 // pred_check_branch
          %219 = sbr.rel (%p217) target = $region28
        $region27: #{tpu_custom_call.1} parent=23 // pred_region
          %s220 = sand.u32 %s40, 1
          %s221 = scalar_lea.sflag [#allocation3], %s220
          %s222 = sand.u32 %s40, 1
          %s223 = smul.addr %s222, 16
          %s224 = scalar_lea.vmem [#allocation2], %s223
          %s225 = smul.u32 2, %s24
          %s227 = ssub.s32 256, 256
          %228 = vsyncadd %s221, %s227
          %s229 = smul.addr %s23, 2
          %s230 = sadd.s32 %s225, %s229
          %s231 = smul.addr %s230, 128
          %s232 = scalar_lea.hbm %s0, %s231
          %s233 = sshll.u32 %s224, 4
          %s234 = int_to_ptr.vmem [resolvable:$true] %s233
          %239 = dma.hbm_to_vmem [thread:$0]  %s232, 256, %s234, %s221, 128, 128, 8
        $region28: #{tpu_custom_call.1} parent=23 // pred_fallthru
          _
      $region24: #{tpu_custom_call.1} parent=5 // pred_fallthru
        _
      %p240 = scmp.le.s32.totalorder 1, %s16
      %p241 = scmp.lt.s32.totalorder %s16, 3
      %p242 = pnand %p240, %p241
      %p243 = pneg %p242
      // Predicated region
      $region29: #{tpu_custom_call.1} parent=5 // pred_check
        _
      $region30: #{tpu_custom_call.1} parent=5 // pred_check_branch
        %245 = sbr.rel (%p242) target = $region32
      $region31: #{tpu_custom_call.1} parent=5 // pred_region
        %s246 = ssub.s32 %s16, 1
        %s247 = sand.u32 %s43, 1
        %s248 = scalar_lea.sflag [#allocation3], %s247
        %s249 = sand.u32 %s43, 1
        %s250 = smul.addr %s249, 16
        %s251 = scalar_lea.vmem [#allocation2], %s250
        // Predicated region
        $region33: #{tpu_custom_call.1} parent=31 // pred_check
          %p252 = pneg %p56
        $region34: #{tpu_custom_call.1} parent=31 // pred_check_branch
          %254 = sbr.rel (%p252) target = $region36
        $region35: #{tpu_custom_call.1} parent=31 // pred_region
          %255 = dma.done %s248, 256
        $region36: #{tpu_custom_call.1} parent=31 // pred_fallthru
          _
        // Predicated region
        $region37: #{tpu_custom_call.1} parent=31 // pred_check
          %p256 = pneg %p77
        $region38: #{tpu_custom_call.1} parent=31 // pred_check_branch
          %258 = sbr.rel (%p256) target = $region40
        $region39: #{tpu_custom_call.1} parent=31 // pred_region
          %259 = dma.done [#allocation5], 1536
        $region40: #{tpu_custom_call.1} parent=31 // pred_fallthru
          _
        %s260 = sand.u32 %s43, 1
        %s261 = scalar_lea.sflag [#allocation3], %s260
        %s262 = sand.u32 %s43, 1
        %s263 = smul.addr %s262, 16
        %s264 = scalar_lea.vmem [#allocation2], %s263
        %p265 = pneg %p56
        %p266 = pneg %p53
        %p267 = pneg %p77
        %p268 = pneg %p74
        %p269 = pneg %p98
        %p270 = pneg %p95
        %p271 = pneg %p126
        %p272 = pneg %p123
        %s273 = smul.u32 2, %s26
        %p274 = scmp.lt.s32.totalorder %s25, 1
        %s275 = scalar_select %p274, %s25, 1
        %p276 = scmp.lt.s32.totalorder %s273, 1
        %s277 = scalar_select %p276, %s273, 1
        %s278 = smul.addr %s275, 8
        %s279 = sadd.s32 %s277, %s278
        %s280 = smul.addr %s279, 8
        %s281 = scalar_lea.vmem %s3, %s280
        %p282 = pneg %p154
        %p283 = pneg %p151
        %s284 = smul.u32 2, %s26
        %p285 = scmp.lt.s32.totalorder %s25, 1
        %s286 = scalar_select %p285, %s25, 1
        %p287 = scmp.lt.s32.totalorder %s284, 1
        %s288 = scalar_select %p287, %s284, 1
        %s289 = smul.addr %s286, 8
        %s290 = sadd.s32 %s288, %s289
        %s291 = smul.addr %s290, 8
        %s292 = scalar_lea.vmem %s4, %s291
        %p293 = pneg %p182
        %p294 = pneg %p179
        %s295 = smul.u32 2, %s26
        %p296 = scmp.lt.s32.totalorder %s25, 1
        %s297 = scalar_select %p296, %s25, 1
        %p298 = scmp.lt.s32.totalorder %s295, 1
        %s299 = scalar_select %p298, %s295, 1
        %s300 = smul.addr %s297, 8
        %s301 = sadd.s32 %s299, %s300
        %s302 = smul.addr %s301, 8
        %s303 = scalar_lea.vmem %s5, %s302
        %s304 = smul.u32 2, %s26
        %s305 = smul.u32 2, %s26
        %p306 = scmp.lt.s32.totalorder %s25, 1
        %s307 = scalar_select %p306, %s25, 1
        %p308 = scmp.lt.s32.totalorder %s305, 1
        %s309 = scalar_select %p308, %s305, 1
        %s310 = smul.addr %s307, 8
        %s311 = sadd.s32 %s309, %s310
        %s312 = smul.addr %s311, 8
        %s313 = scalar_lea.vmem %s3, %s312
        %s314 = smul.u32 2, %s26
        %s315 = smul.u32 2, %s26
        %p316 = scmp.lt.s32.totalorder %s25, 1
        %s317 = scalar_select %p316, %s25, 1
        %p318 = scmp.lt.s32.totalorder %s315, 1
        %s319 = scalar_select %p318, %s315, 1
        %s320 = smul.addr %s317, 8
        %s321 = sadd.s32 %s319, %s320
        %s322 = smul.addr %s321, 8
        %s323 = scalar_lea.vmem %s4, %s322
        %s324 = smul.u32 2, %s26
        %s325 = smul.u32 2, %s26
        %p326 = scmp.lt.s32.totalorder %s25, 1
        %s327 = scalar_select %p326, %s25, 1
        %p328 = scmp.lt.s32.totalorder %s325, 1
        %s329 = scalar_select %p328, %s325, 1
        %s330 = smul.addr %s327, 8
        %s331 = sadd.s32 %s329, %s330
        %s332 = smul.addr %s331, 8
        %s333 = scalar_lea.vmem %s5, %s332
        %s334 = smul.u32 2, %s26
        %v335 = vld [vmem:[%s251] sm:$0xff]
        %v336 = vld [vmem:[%s251 + $0x8] sm:$0xff]
        %v337 = vld [vmem:[#allocation4] sm:$0xff]
        %v338 = vld [vmem:[#allocation4 + $0x8] sm:$0xff]
        %v339 = vld [vmem:[#allocation4 + $0x10] sm:$0xff]
        %v340 = vld [vmem:[#allocation4 + $0x18] sm:$0xff]
        %v341 = vld [vmem:[%s2] sm:$0x1]
        %v343 = vlaneseq
        %v344 = vshrl.u32 %v343, 7
        %v345 = vsub.s32 0, %v344
        %v346 = vrot.slane %v341, %v345
        %vm348 = vcmask 261120
        %v350 = vsel %vm348, %v335, 0
        %v353 = vsel %vm348, %v336, 0
        %355 = vmatprep.subr.mxu0 0.0
        %356 = vmatpush1.msra.mxu0 0.0
        %357 = vmatprep.subr.mxu0 0.0
        %358 = vmatpush1.msra.mxu0 0.0
        %359 = vmatprep.subr.mxu0 0.0
        %360 = vmatpush1.msra.mxu0 0.0
        %361 = vmatprep.subr.mxu0 0.0
        %362 = vmatpush1.msra.mxu0 0.0
        %363 = vmatprep.subr.mxu0 0.0
        %364 = vmatpush1.msra.mxu0 0.0
        %365 = vmatprep.subr.mxu0 0.0
        %366 = vmatpush1.msra.mxu0 0.0
        %367 = vmatprep.subr.mxu0 0.0
        %368 = vmatpush1.msra.mxu0 0.0
        %369 = vmatprep.subr.mxu0 0.0
        %370 = vmatpush1.msra.mxu0 0.0
        %371 = vmatprep.subr.mxu0 0.0
        %372 = vmatpush1.msra.mxu0 0.0
        %373 = vmatprep.subr.mxu0 0.0
        %374 = vmatpush1.msra.mxu0 0.0
        %375 = vmatprep.subr.mxu0 0.0
        %376 = vmatpush1.msra.mxu0 0.0
        %377 = vmatprep.subr.mxu0 0.0
        %378 = vmatpush1.msra.mxu0 0.0
        %379 = vmatprep.subr.mxu0 0.0
        %380 = vmatpush1.msra.mxu0 %v340
        %381 = vmatprep.subr.mxu0 0.0
        %382 = vmatpush1.msra.mxu0 %v339
        %383 = vmatprep.subr.mxu0 0.0
        %384 = vmatpush1.msra.mxu0 %v338
        %385 = vmatprep.subr.mxu0 0.0
        %386 = vmatpush1.msra.mxu0 %v337
        %387 = vmatprep.subr.mxu0 0.0
        %388 = vmatpush2.msra.mxu0 0.0
        %389 = vmatprep.subr.mxu0 0.0
        %390 = vmatpush2.msra.mxu0 0.0
        %391 = vmatprep.subr.mxu0 0.0
        %392 = vmatpush2.msra.mxu0 0.0
        %393 = vmatprep.subr.mxu0 0.0
        %394 = vmatpush2.msra.mxu0 0.0
        %395 = vmatprep.subr.mxu0 0.0
        %396 = vmatpush2.msra.mxu0 0.0
        %397 = vmatprep.subr.mxu0 0.0
        %398 = vmatpush2.msra.mxu0 0.0
        %399 = vmatprep.subr.mxu0 0.0
        %400 = vmatpush2.msra.mxu0 0.0
        %401 = vmatprep.subr.mxu0 0.0
        %402 = vmatpush2.msra.mxu0 0.0
        %403 = vmatprep.subr.mxu0 0.0
        %404 = vmatpush2.msra.mxu0 0.0
        %405 = vmatprep.subr.mxu0 0.0
        %406 = vmatpush2.msra.mxu0 0.0
        %407 = vmatprep.subr.mxu0 0.0
        %408 = vmatpush2.msra.mxu0 0.0
        %409 = vmatprep.subr.mxu0 0.0
        %410 = vmatpush2.msra.mxu0 0.0
        %411 = vmatprep.subr.mxu0 0.0
        %412 = vmatpush2.msra.mxu0 0.0
        %413 = vmatprep.subr.mxu0 0.0
        %414 = vmatpush2.msra.mxu0 0.0
        %415 = vmatprep.subr.mxu0 0.0
        %416 = vmatpush2.msra.mxu0 0.0
        %417 = vmatprep.subr.mxu0 0.0
        %418 = vmatpush2.msra.mxu0 0.0
        %419 = vmatprep.mubr.f32.mxu0 0.0
        %420 = vmatmul.mubr.f32.gmra.mxu0 %v350
        %v421 = vpop.f32.mrf.mxu0
        %v422 = vadd.f32 %v346, %v421
        %v423 = vpop.f32.mrf.mxu0
        %424 = vmatprep.mubr.f32.mxu0 0.0
        %425 = vmatmul.mubr.f32.gmra.mxu0 %v353
        %v426 = vpop.f32.mrf.mxu0
        %v427 = vadd.f32 %v346, %v426
        %v428 = vpop.f32.mrf.mxu0
        %429 = vdwg.mxu0
        %432 = vrot.lane.b32.xlu0 %v422, 120
        %v433 = vpop.permute.xlu0 %432
        %434 = vrot.lane.b32.xlu0 %v427, 120
        %v435 = vpop.permute.xlu0 %434
        %438 = vrot.lane.b32.xlu0 %v422, 112
        %v439 = vpop.permute.xlu0 %438
        %440 = vrot.lane.b32.xlu0 %v427, 112
        %v441 = vpop.permute.xlu0 %440
        %444 = vrot.lane.b32.xlu0 %v422, 104
        %v445 = vpop.permute.xlu0 %444
        %446 = vrot.lane.b32.xlu0 %v427, 104
        %v447 = vpop.permute.xlu0 %446
        %vm450 = vcmask 64512
        %451 = vst.msk [vmem:[%s313] sm:$0xff] %vm450, %v422
        %452 = vst.msk [vmem:[%s313 + $0x8] sm:$0xff] %vm450, %v427
        %453 = vst.msk [vmem:[%s313 + $0x10] sm:$0xff] %vm450, %v433
        %454 = vst.msk [vmem:[%s313 + $0x18] sm:$0xff] %vm450, %v435
        %455 = vst.msk [vmem:[%s313 + $0x20] sm:$0xff] %vm450, %v439
        %456 = vst.msk [vmem:[%s313 + $0x28] sm:$0xff] %vm450, %v441
        %457 = vst.msk [vmem:[%s313 + $0x30] sm:$0xff] %vm450, %v445
        %458 = vst.msk [vmem:[%s313 + $0x38] sm:$0xff] %vm450, %v447
        %s459 = scalar_lea.vmem [#allocation4], 32
        %v460 = vld [vmem:[%s459] sm:$0xff]
        %v461 = vld [vmem:[%s459 + $0x8] sm:$0xff]
        %v462 = vld [vmem:[%s459 + $0x10] sm:$0xff]
        %v463 = vld [vmem:[%s459 + $0x18] sm:$0xff]
        %s464 = scalar_lea.vmem %s2, 1
        %v465 = vld [vmem:[%s464] sm:$0x1]
        %v467 = vlaneseq
        %v468 = vshrl.u32 %v467, 7
        %v469 = vsub.s32 0, %v468
        %v470 = vrot.slane %v465, %v469
        %472 = vmatprep.subr.mxu0 0.0
        %473 = vmatpush1.msra.mxu0 0.0
        %474 = vmatprep.subr.mxu0 0.0
        %475 = vmatpush1.msra.mxu0 0.0
        %476 = vmatprep.subr.mxu0 0.0
        %477 = vmatpush1.msra.mxu0 0.0
        %478 = vmatprep.subr.mxu0 0.0
        %479 = vmatpush1.msra.mxu0 0.0
        %480 = vmatprep.subr.mxu0 0.0
        %481 = vmatpush1.msra.mxu0 0.0
        %482 = vmatprep.subr.mxu0 0.0
        %483 = vmatpush1.msra.mxu0 0.0
        %484 = vmatprep.subr.mxu0 0.0
        %485 = vmatpush1.msra.mxu0 0.0
        %486 = vmatprep.subr.mxu0 0.0
        %487 = vmatpush1.msra.mxu0 0.0
        %488 = vmatprep.subr.mxu0 0.0
        %489 = vmatpush1.msra.mxu0 0.0
        %490 = vmatprep.subr.mxu0 0.0
        %491 = vmatpush1.msra.mxu0 0.0
        %492 = vmatprep.subr.mxu0 0.0
        %493 = vmatpush1.msra.mxu0 0.0
        %494 = vmatprep.subr.mxu0 0.0
        %495 = vmatpush1.msra.mxu0 0.0
        %496 = vmatprep.subr.mxu0 0.0
        %497 = vmatpush1.msra.mxu0 %v463
        %498 = vmatprep.subr.mxu0 0.0
        %499 = vmatpush1.msra.mxu0 %v462
        %500 = vmatprep.subr.mxu0 0.0
        %501 = vmatpush1.msra.mxu0 %v461
        %502 = vmatprep.subr.mxu0 0.0
        %503 = vmatpush1.msra.mxu0 %v460
        %504 = vmatprep.subr.mxu0 0.0
        %505 = vmatpush2.msra.mxu0 0.0
        %506 = vmatprep.subr.mxu0 0.0
        %507 = vmatpush2.msra.mxu0 0.0
        %508 = vmatprep.subr.mxu0 0.0
        %509 = vmatpush2.msra.mxu0 0.0
        %510 = vmatprep.subr.mxu0 0.0
        %511 = vmatpush2.msra.mxu0 0.0
        %512 = vmatprep.subr.mxu0 0.0
        %513 = vmatpush2.msra.mxu0 0.0
        %514 = vmatprep.subr.mxu0 0.0
        %515 = vmatpush2.msra.mxu0 0.0
        %516 = vmatprep.subr.mxu0 0.0
        %517 = vmatpush2.msra.mxu0 0.0
        %518 = vmatprep.subr.mxu0 0.0
        %519 = vmatpush2.msra.mxu0 0.0
        %520 = vmatprep.subr.mxu0 0.0
        %521 = vmatpush2.msra.mxu0 0.0
        %522 = vmatprep.subr.mxu0 0.0
        %523 = vmatpush2.msra.mxu0 0.0
        %524 = vmatprep.subr.mxu0 0.0
        %525 = vmatpush2.msra.mxu0 0.0
        %526 = vmatprep.subr.mxu0 0.0
        %527 = vmatpush2.msra.mxu0 0.0
        %528 = vmatprep.subr.mxu0 0.0
        %529 = vmatpush2.msra.mxu0 0.0
        %530 = vmatprep.subr.mxu0 0.0
        %531 = vmatpush2.msra.mxu0 0.0
        %532 = vmatprep.subr.mxu0 0.0
        %533 = vmatpush2.msra.mxu0 0.0
        %534 = vmatprep.subr.mxu0 0.0
        %535 = vmatpush2.msra.mxu0 0.0
        %536 = vmatprep.mubr.f32.mxu0 0.0
        %537 = vmatmul.mubr.f32.gmra.mxu0 %v350
        %v538 = vpop.f32.mrf.mxu0
        %v539 = vadd.f32 %v470, %v538
        %v540 = vpop.f32.mrf.mxu0
        %541 = vmatprep.mubr.f32.mxu0 0.0
        %542 = vmatmul.mubr.f32.gmra.mxu0 %v353
        %v543 = vpop.f32.mrf.mxu0
        %v544 = vadd.f32 %v470, %v543
        %v545 = vpop.f32.mrf.mxu0
        %546 = vdwg.mxu0
        %549 = vrot.lane.b32.xlu0 %v539, 120
        %v550 = vpop.permute.xlu0 %549
        %551 = vrot.lane.b32.xlu0 %v544, 120
        %v552 = vpop.permute.xlu0 %551
        %555 = vrot.lane.b32.xlu0 %v539, 112
        %v556 = vpop.permute.xlu0 %555
        %557 = vrot.lane.b32.xlu0 %v544, 112
        %v558 = vpop.permute.xlu0 %557
        %561 = vrot.lane.b32.xlu0 %v539, 104
        %v562 = vpop.permute.xlu0 %561
        %563 = vrot.lane.b32.xlu0 %v544, 104
        %v564 = vpop.permute.xlu0 %563
        %567 = vst.msk [vmem:[%s323] sm:$0xff] %vm450, %v539
        %568 = vst.msk [vmem:[%s323 + $0x8] sm:$0xff] %vm450, %v544
        %569 = vst.msk [vmem:[%s323 + $0x10] sm:$0xff] %vm450, %v550
        %570 = vst.msk [vmem:[%s323 + $0x18] sm:$0xff] %vm450, %v552
        %571 = vst.msk [vmem:[%s323 + $0x20] sm:$0xff] %vm450, %v556
        %572 = vst.msk [vmem:[%s323 + $0x28] sm:$0xff] %vm450, %v558
        %573 = vst.msk [vmem:[%s323 + $0x30] sm:$0xff] %vm450, %v562
        %574 = vst.msk [vmem:[%s323 + $0x38] sm:$0xff] %vm450, %v564
        %s575 = scalar_lea.vmem [#allocation4], 64
        %v576 = vld [vmem:[%s575] sm:$0xff]
        %v577 = vld [vmem:[%s575 + $0x8] sm:$0xff]
        %v578 = vld [vmem:[%s575 + $0x10] sm:$0xff]
        %v579 = vld [vmem:[%s575 + $0x18] sm:$0xff]
        %s580 = scalar_lea.vmem %s2, 2
        %v581 = vld [vmem:[%s580] sm:$0x1]
        %v583 = vlaneseq
        %v584 = vshrl.u32 %v583, 7
        %v585 = vsub.s32 0, %v584
        %v586 = vrot.slane %v581, %v585
        %588 = vmatprep.subr.mxu0 0.0
        %589 = vmatpush1.msra.mxu0 0.0
        %590 = vmatprep.subr.mxu0 0.0
        %591 = vmatpush1.msra.mxu0 0.0
        %592 = vmatprep.subr.mxu0 0.0
        %593 = vmatpush1.msra.mxu0 0.0
        %594 = vmatprep.subr.mxu0 0.0
        %595 = vmatpush1.msra.mxu0 0.0
        %596 = vmatprep.subr.mxu0 0.0
        %597 = vmatpush1.msra.mxu0 0.0
        %598 = vmatprep.subr.mxu0 0.0
        %599 = vmatpush1.msra.mxu0 0.0
        %600 = vmatprep.subr.mxu0 0.0
        %601 = vmatpush1.msra.mxu0 0.0
        %602 = vmatprep.subr.mxu0 0.0
        %603 = vmatpush1.msra.mxu0 0.0
        %604 = vmatprep.subr.mxu0 0.0
        %605 = vmatpush1.msra.mxu0 0.0
        %606 = vmatprep.subr.mxu0 0.0
        %607 = vmatpush1.msra.mxu0 0.0
        %608 = vmatprep.subr.mxu0 0.0
        %609 = vmatpush1.msra.mxu0 0.0
        %610 = vmatprep.subr.mxu0 0.0
        %611 = vmatpush1.msra.mxu0 0.0
        %612 = vmatprep.subr.mxu0 0.0
        %613 = vmatpush1.msra.mxu0 %v579
        %614 = vmatprep.subr.mxu0 0.0
        %615 = vmatpush1.msra.mxu0 %v578
        %616 = vmatprep.subr.mxu0 0.0
        %617 = vmatpush1.msra.mxu0 %v577
        %618 = vmatprep.subr.mxu0 0.0
        %619 = vmatpush1.msra.mxu0 %v576
        %620 = vmatprep.subr.mxu0 0.0
        %621 = vmatpush2.msra.mxu0 0.0
        %622 = vmatprep.subr.mxu0 0.0
        %623 = vmatpush2.msra.mxu0 0.0
        %624 = vmatprep.subr.mxu0 0.0
        %625 = vmatpush2.msra.mxu0 0.0
        %626 = vmatprep.subr.mxu0 0.0
        %627 = vmatpush2.msra.mxu0 0.0
        %628 = vmatprep.subr.mxu0 0.0
        %629 = vmatpush2.msra.mxu0 0.0
        %630 = vmatprep.subr.mxu0 0.0
        %631 = vmatpush2.msra.mxu0 0.0
        %632 = vmatprep.subr.mxu0 0.0
        %633 = vmatpush2.msra.mxu0 0.0
        %634 = vmatprep.subr.mxu0 0.0
        %635 = vmatpush2.msra.mxu0 0.0
        %636 = vmatprep.subr.mxu0 0.0
        %637 = vmatpush2.msra.mxu0 0.0
        %638 = vmatprep.subr.mxu0 0.0
        %639 = vmatpush2.msra.mxu0 0.0
        %640 = vmatprep.subr.mxu0 0.0
        %641 = vmatpush2.msra.mxu0 0.0
        %642 = vmatprep.subr.mxu0 0.0
        %643 = vmatpush2.msra.mxu0 0.0
        %644 = vmatprep.subr.mxu0 0.0
        %645 = vmatpush2.msra.mxu0 0.0
        %646 = vmatprep.subr.mxu0 0.0
        %647 = vmatpush2.msra.mxu0 0.0
        %648 = vmatprep.subr.mxu0 0.0
        %649 = vmatpush2.msra.mxu0 0.0
        %650 = vmatprep.subr.mxu0 0.0
        %651 = vmatpush2.msra.mxu0 0.0
        %652 = vmatprep.mubr.f32.mxu0 0.0
        %653 = vmatmul.mubr.f32.gmra.mxu0 %v350
        %v654 = vpop.f32.mrf.mxu0
        %v655 = vadd.f32 %v586, %v654
        %v656 = vpop.f32.mrf.mxu0
        %657 = vmatprep.mubr.f32.mxu0 0.0
        %658 = vmatmul.mubr.f32.gmra.mxu0 %v353
        %v659 = vpop.f32.mrf.mxu0
        %v660 = vadd.f32 %v586, %v659
        %v661 = vpop.f32.mrf.mxu0
        %662 = vdwg.mxu0
        %665 = vrot.lane.b32.xlu0 %v655, 120
        %v666 = vpop.permute.xlu0 %665
        %667 = vrot.lane.b32.xlu0 %v660, 120
        %v668 = vpop.permute.xlu0 %667
        %671 = vrot.lane.b32.xlu0 %v655, 112
        %v672 = vpop.permute.xlu0 %671
        %673 = vrot.lane.b32.xlu0 %v660, 112
        %v674 = vpop.permute.xlu0 %673
        %677 = vrot.lane.b32.xlu0 %v655, 104
        %v678 = vpop.permute.xlu0 %677
        %679 = vrot.lane.b32.xlu0 %v660, 104
        %v680 = vpop.permute.xlu0 %679
        %683 = vst.msk [vmem:[%s333] sm:$0xff] %vm450, %v655
        %684 = vst.msk [vmem:[%s333 + $0x8] sm:$0xff] %vm450, %v660
        %685 = vst.msk [vmem:[%s333 + $0x10] sm:$0xff] %vm450, %v666
        %686 = vst.msk [vmem:[%s333 + $0x18] sm:$0xff] %vm450, %v668
        %687 = vst.msk [vmem:[%s333 + $0x20] sm:$0xff] %vm450, %v672
        %688 = vst.msk [vmem:[%s333 + $0x28] sm:$0xff] %vm450, %v674
        %689 = vst.msk [vmem:[%s333 + $0x30] sm:$0xff] %vm450, %v678
        %690 = vst.msk [vmem:[%s333 + $0x38] sm:$0xff] %vm450, %v680
        %s691 = smul.u32 2, %s26
        %p692 = scmp.lt.s32.totalorder %s25, 1
        %s693 = scalar_select %p692, %s25, 1
        %p694 = scmp.lt.s32.totalorder %s691, 1
        %s695 = scalar_select %p694, %s691, 1
        %s696 = smul.addr %s693, 8
        %s697 = sadd.s32 %s695, %s696
        %s698 = smul.addr %s697, 8
        %s699 = scalar_lea.vmem %s3, %s698
        %s700 = smul.u32 2, %s26
        %p701 = scmp.lt.s32.totalorder %s25, 1
        %s702 = scalar_select %p701, %s25, 1
        %p703 = scmp.lt.s32.totalorder %s700, 1
        %s704 = scalar_select %p703, %s700, 1
        %s705 = smul.addr %s702, 8
        %s706 = sadd.s32 %s704, %s705
        %s707 = smul.addr %s706, 8
        %s708 = scalar_lea.vmem %s4, %s707
        %s709 = smul.u32 2, %s26
        %p710 = scmp.lt.s32.totalorder %s25, 1
        %s711 = scalar_select %p710, %s25, 1
        %p712 = scmp.lt.s32.totalorder %s709, 1
        %s713 = scalar_select %p712, %s709, 1
        %s714 = smul.addr %s711, 8
        %s715 = sadd.s32 %s713, %s714
        %s716 = smul.addr %s715, 8
        %s717 = scalar_lea.vmem %s5, %s716
        // Predicated region
        $region41: #{tpu_custom_call.1} parent=31 // pred_check
          %p718 = pneg %p123
        $region42: #{tpu_custom_call.1} parent=31 // pred_check_branch
          %720 = sbr.rel (%p718) target = $region44
        $region43: #{tpu_custom_call.1} parent=31 // pred_region
          %s721 = smul.u32 2, %s26
        $region44: #{tpu_custom_call.1} parent=31 // pred_fallthru
          _
        // Predicated region
        $region45: #{tpu_custom_call.1} parent=31 // pred_check
          %p722 = pneg %p151
        $region46: #{tpu_custom_call.1} parent=31 // pred_check_branch
          %724 = sbr.rel (%p722) target = $region48
        $region47: #{tpu_custom_call.1} parent=31 // pred_region
          %s725 = smul.u32 2, %s26
        $region48: #{tpu_custom_call.1} parent=31 // pred_fallthru
          _
        // Predicated region
        $region49: #{tpu_custom_call.1} parent=31 // pred_check
          %p726 = pneg %p179
        $region50: #{tpu_custom_call.1} parent=31 // pred_check_branch
          %728 = sbr.rel (%p726) target = $region52
        $region51: #{tpu_custom_call.1} parent=31 // pred_region
          %s729 = smul.u32 2, %s26
        $region52: #{tpu_custom_call.1} parent=31 // pred_fallthru
          _
      $region32: #{tpu_custom_call.1} parent=5 // pred_fallthru
        _
      %p730 = scmp.le.s32.totalorder 2, %s16
      // Predicated region
      $region53: #{tpu_custom_call.1} parent=5 // pred_check
        %p731 = pneg %p730
      $region54: #{tpu_custom_call.1} parent=5 // pred_check_branch
        %733 = sbr.rel (%p731) target = $region56
      $region55: #{tpu_custom_call.1} parent=5 // pred_region
        %s734 = ssub.s32 %s16, 2
        // Predicated region
        $region57: #{tpu_custom_call.1} parent=55 // pred_check
          %p735 = pneg %p129
        $region58: #{tpu_custom_call.1} parent=55 // pred_check_branch
          %737 = sbr.rel (%p735) target = $region60
        $region59: #{tpu_custom_call.1} parent=55 // pred_region
          %s738 = smul.u32 2, %s28
          %p739 = scmp.lt.s32.totalorder %s27, 1
          %s740 = scalar_select %p739, %s27, 1
          %p741 = scmp.lt.s32.totalorder %s738, 1
          %s742 = scalar_select %p741, %s738, 1
          %s743 = smul.addr %s740, 8
          %s744 = sadd.s32 %s742, %s743
          %s745 = smul.addr %s744, 8
          %s746 = scalar_lea.vmem %s3, %s745
        $region60: #{tpu_custom_call.1} parent=55 // pred_fallthru
          _
        // Predicated region
        $region61: #{tpu_custom_call.1} parent=55 // pred_check
          %p747 = pneg %p157
        $region62: #{tpu_custom_call.1} parent=55 // pred_check_branch
          %749 = sbr.rel (%p747) target = $region64
        $region63: #{tpu_custom_call.1} parent=55 // pred_region
          %s750 = smul.u32 2, %s28
          %p751 = scmp.lt.s32.totalorder %s27, 1
          %s752 = scalar_select %p751, %s27, 1
          %p753 = scmp.lt.s32.totalorder %s750, 1
          %s754 = scalar_select %p753, %s750, 1
          %s755 = smul.addr %s752, 8
          %s756 = sadd.s32 %s754, %s755
          %s757 = smul.addr %s756, 8
          %s758 = scalar_lea.vmem %s4, %s757
        $region64: #{tpu_custom_call.1} parent=55 // pred_fallthru
          _
        // Predicated region
        $region65: #{tpu_custom_call.1} parent=55 // pred_check
          %p759 = pneg %p185
        $region66: #{tpu_custom_call.1} parent=55 // pred_check_branch
          %761 = sbr.rel (%p759) target = $region68
        $region67: #{tpu_custom_call.1} parent=55 // pred_region
          %s762 = smul.u32 2, %s28
          %p763 = scmp.lt.s32.totalorder %s27, 1
          %s764 = scalar_select %p763, %s27, 1
          %p765 = scmp.lt.s32.totalorder %s762, 1
          %s766 = scalar_select %p765, %s762, 1
          %s767 = smul.addr %s764, 8
          %s768 = sadd.s32 %s766, %s767
          %s769 = smul.addr %s768, 8
          %s770 = scalar_lea.vmem %s5, %s769
        $region68: #{tpu_custom_call.1} parent=55 // pred_fallthru
          _
      $region56: #{tpu_custom_call.1} parent=5 // pred_fallthru
        _
    $region6: #{tpu_custom_call.1} parent=1 // loop_footer
      %s20 = sadd.s32 1, %s16
    $region7: #{tpu_custom_call.1} parent=1 // loop_footer_branch
      %15 = sbr.rel target = $region3
    $region8: #{tpu_custom_call.1} parent=1 // loop_exit
      _
    %771 = vsyncpa [#allocation3], 1
    %s772 = scalar_lea.sflag [#allocation3], 1
    %773 = vsyncpa %s772, 1
    %774 = vsyncpa [#allocation5], 1

</llo_original>
